<compile_context>
chip_gen: v6e
topology: v6e:2x2x1
jax: 0.10.0
libtpu: 0.0.40
codegen_flags: <defaults>
</compile_context>

<pallas_src>
import functools
import math

import jax
import jax.numpy as jnp
from jax.experimental import pallas as pl
from jax.experimental.pallas import tpu as pltpu


def _round_up(x, m):
    return (x + m - 1) // m * m


# ---------------------------------------------------------------------------
# Kernel: one (row-tile i, k-tile) step of  out = diag(1/deg) (A @ (X @ W)) + b
# ---------------------------------------------------------------------------
def _gcn_layer_kernel(a_ref, x_ref, w_ref, b_ref, inv_deg_ref, out_ref, acc_ref):
    k = pl.program_id(1)

    @pl.when(k == 0)
    def _():
        acc_ref[...] = jnp.zeros_like(acc_ref)

    # Project this K-tile of node features first (tiny matmul), then aggregate
    # the (bm, bk) adjacency tile on the MXU with f32 accumulation.
    xw = jnp.dot(x_ref[...], w_ref[...], preferred_element_type=jnp.float32)
    acc_ref[...] += jnp.dot(a_ref[...], xw.astype(jnp.bfloat16),
                            preferred_element_type=jnp.float32)

    @pl.when(k == pl.num_programs(1) - 1)
    def _():
        # DGL mean reduce folded in as an f32 row scaling, then nn.Linear bias.
        out_ref[...] = (acc_ref[...] * inv_deg_ref[...]
                        + b_ref[...]).astype(out_ref.dtype)


# ---------------------------------------------------------------------------
# Wrapper
# ---------------------------------------------------------------------------
@functools.partial(jax.jit, static_argnames=("block_m", "block_k"))
def gcn_layer_forward(adj, features, weight, bias, *, block_m=256, block_k=256):
    """GCNLayer.forward: mean aggregation over in-neighbors + Linear.

    adj[i, j] != 0  <=>  edge j -> i  (row i lists the in-neighbors of node i).
    """
    n = adj.shape[0]
    f_in = features.shape[-1]
    f_out = weight.shape[-1]

    adj_f32 = adj.astype(jnp.float32)
    # Degrees in f32 BEFORE the bf16 cast of A (exact for any degree).
    in_deg = jnp.sum(adj_f32, axis=1, keepdims=True)                  # (N, 1)
    inv_deg = jnp.where(in_deg > 0.0, 1.0 / in_deg, 0.0)              # 0 msgs -> 0

    # Tile sizing: blocks are multiples of 128; pad N so both tiles divide it.
    n128 = _round_up(max(n, 1), 128)
    bm = min(block_m, n128)
    bk = min(block_k, n128)
    n_pad = _round_up(n128, math.lcm(bm, bk))
    pad = n_pad - n

    # Padded rows/cols of A are zero -> contribute nothing; padded output rows
    # are sliced away below.  A and X are cast to bf16 exactly once here.
    a_bf16 = jnp.pad(adj_f32, ((0, pad), (0, pad))).astype(jnp.bfloat16)
    x_bf16 = jnp.pad(features.astype(jnp.float32),
                     ((0, pad), (0, 0))).astype(jnp.bfloat16)
    inv_deg = jnp.pad(inv_deg, ((0, pad), (0, 0)))                    # (N_pad, 1) f32
    w_bf16 = weight.astype(jnp.bfloat16)                              # (F_in, F_out)
    b_f32 = bias.reshape(1, f_out).astype(jnp.float32)                # (1, F_out)

    grid = (n_pad // bm, n_pad // bk)

    flops = 2 * n_pad * n_pad * f_out + 2 * grid[0] * n_pad * f_in * f_out
    bytes_accessed = (a_bf16.size * 2                      # A, streamed once (bf16)
                      + x_bf16.size * 2 * grid[0]          # X per row-tile (bf16)
                      + w_bf16.size * 2 + b_f32.size * 4 + inv_deg.size * 4
                      + n_pad * f_out * 4)                 # output (f32)

    out = pl.pallas_call(
        _gcn_layer_kernel,
        out_shape=jax.ShapeDtypeStruct((n_pad, f_out), jnp.float32),
        grid=grid,
        in_specs=[
            pl.BlockSpec((bm, bk), lambda i, k: (i, k)),       # A tile (bf16)
            pl.BlockSpec((bk, f_in), lambda i, k: (k, 0)),     # X tile (bf16)
            pl.BlockSpec((f_in, f_out), lambda i, k: (0, 0)),  # W (resident)
            pl.BlockSpec((1, f_out), lambda i, k: (0, 0)),     # bias (f32)
            pl.BlockSpec((bm, 1), lambda i, k: (i, 0)),        # 1/in_deg (f32)
        ],
        out_specs=pl.BlockSpec((bm, f_out), lambda i, k: (i, 0)),
        scratch_shapes=[pltpu.VMEM((bm, f_out), jnp.float32)],
        compiler_params=pltpu.CompilerParams(
            dimension_semantics=("parallel", "arbitrary"),
            vmem_limit_bytes=48 * 1024 * 1024,
        ),
        cost_estimate=pl.CostEstimate(flops=flops, transcendentals=0,
                                      bytes_accessed=bytes_accessed),
    )(a_bf16, x_bf16, w_bf16, b_f32, inv_deg)

    return out[:n]


def init_gcn_params(key, in_feats, out_feats):
    """torch nn.Linear default init; weight stored as (in, out)."""
    kw, kb = jax.random.split(key)
    bound = 1.0 / (in_feats ** 0.5)
    weight = jax.random.uniform(kw, (in_feats, out_feats), jnp.float32, -bound, bound)
    bias = jax.random.uniform(kb, (out_feats,), jnp.float32, -bound, bound)
    return weight, bias


if __name__ == "__main__":
    N_NODES = 256
    IN_FEATS = 16
    OUT_FEATS = 128

    key = jax.random.PRNGKey(0)
    k_adj, k_feat, k_param = jax.random.split(key, 3)

    # Random adjacency (row i = in-neighbors of node i) with self-loops.
    a = (jax.random.uniform(k_adj, (N_NODES, N_NODES)) < 0.05).astype(jnp.float32)
    adj = jnp.clip(a + jnp.eye(N_NODES, dtype=jnp.float32), 0.0, 1.0)

    features = jax.random.normal(k_feat, (N_NODES, IN_FEATS), jnp.float32)
    weight, bias = init_gcn_params(k_param, IN_FEATS, OUT_FEATS)

    # Small blocks so the demo exercises the (2, 2) grid: parallel row axis,
    # trailing K-reduction axis with pl.when accumulation.
    out = gcn_layer_forward(adj, features, weight, bias, block_m=128, block_k=128)
    jax.block_until_ready(out)

    # Pure-JAX f32 reference of the module's forward.
    deg = jnp.sum(adj, axis=1, keepdims=True)
    a_mean = jnp.where(deg > 0, adj / jnp.maximum(deg, 1.0), 0.0)
    ref = a_mean @ features @ weight + bias[None, :]

    assert out.shape == (N_NODES, OUT_FEATS)
    assert bool(jnp.all(jnp.isfinite(out)))
    max_err = float(jnp.max(jnp.abs(out - ref)))
    assert max_err < 5e-2, f"max abs error vs reference: {max_err}"
    print("KERNEL_OK")
</pallas_src>

<mosaic_0001>
module attributes {stable_mosaic.version = 11 : i64} {
  func.func @_gcn_layer_kernel(%arg0: i32, %arg1: i32, %arg2: memref<128x128xbf16, #tpu.memory_space<vmem>>, %arg3: memref<128x16xbf16, #tpu.memory_space<vmem>>, %arg4: memref<16x128xbf16, #tpu.memory_space<vmem>>, %arg5: memref<1x128xf32, #tpu.memory_space<vmem>>, %arg6: memref<128x1xf32, #tpu.memory_space<vmem>>, %arg7: memref<128x128xf32, #tpu.memory_space<vmem>>, %arg8: memref<128x128xf32, #tpu.memory_space<vmem>>) attributes {dimension_semantics = [#tpu.dimension_semantics<parallel>, #tpu.dimension_semantics<arbitrary>], iteration_bounds = array<i64: 2, 2>, scalar_prefetch = 0 : i64, scratch_operands = 1 : i64, tpu.core_type = #tpu.core_type<tc>, window_params = [{transform_indices = @transform_0, window_bounds = array<i64: 128, 128>}, {transform_indices = @transform_1, window_bounds = array<i64: 128, 16>}, {pipeline_mode = #tpu.pipeline_mode<synchronous>, transform_indices = @transform_2, window_bounds = array<i64: 16, 128>}, {pipeline_mode = #tpu.pipeline_mode<synchronous>, transform_indices = @transform_3, window_bounds = array<i64: 1, 128>}, {transform_indices = @transform_4, window_bounds = array<i64: 128, 1>}, {transform_indices = @transform_5, window_bounds = array<i64: 128, 128>}]} {
    %c0_i32 = arith.constant 0 : i32
    %0 = arith.cmpi eq, %arg1, %c0_i32 : i32
    %1 = arith.extui %0 : i1 to i32
    %c0_i32_0 = arith.constant 0 : i32
    %2 = arith.cmpi ne, %1, %c0_i32_0 : i32
    scf.if %2 {
      %cst_12 = arith.constant 0.000000e+00 : f32
      %15 = vector.broadcast %cst_12 : f32 to vector<128x128xf32>
      %c0_13 = arith.constant 0 : index
      %c0_14 = arith.constant 0 : index
      %16 = vector.load %arg8[%c0_13, %c0_14] : memref<128x128xf32, #tpu.memory_space<vmem>>, vector<128x128xf32>
      tpu.vector_store %arg8[%c0_13, %c0_14], %15 {strides = array<i32>} : memref<128x128xf32, #tpu.memory_space<vmem>>, vector<128x128xf32>,
    } else {
    }
    %c0 = arith.constant 0 : index
    %c0_1 = arith.constant 0 : index
    %3 = vector.load %arg3[%c0, %c0_1] : memref<128x16xbf16, #tpu.memory_space<vmem>>, vector<128x16xbf16>
    %c0_2 = arith.constant 0 : index
    %c0_3 = arith.constant 0 : index
    %4 = vector.load %arg4[%c0_2, %c0_3] : memref<16x128xbf16, #tpu.memory_space<vmem>>, vector<16x128xbf16>
    %cst = arith.constant dense<0.000000e+00> : vector<128x128xf32>
    %5 = tpu.matmul %3, %4, %cst {dimension_numbers = #tpu.dot_dimension_numbers<[1], [0], [0], [1], [0, 0, 1, 1], [], []>} : vector<128x16xbf16>, vector<16x128xbf16>, vector<128x128xf32> -> vector<128x128xf32>
    %c0_4 = arith.constant 0 : index
    %c0_5 = arith.constant 0 : index
    %6 = vector.load %arg8[%c0_4, %c0_5] : memref<128x128xf32, #tpu.memory_space<vmem>>, vector<128x128xf32>
    %c0_6 = arith.constant 0 : index
    %c0_7 = arith.constant 0 : index
    %7 = vector.load %arg2[%c0_6, %c0_7] : memref<128x128xbf16, #tpu.memory_space<vmem>>, vector<128x128xbf16>
    %8 = arith.truncf %5 : vector<128x128xf32> to vector<128x128xbf16>
    %cst_8 = arith.constant dense<0.000000e+00> : vector<128x128xf32>
    %9 = tpu.matmul %7, %8, %cst_8 {dimension_numbers = #tpu.dot_dimension_numbers<[1], [0], [0], [1], [0, 0, 1, 1], [], []>} : vector<128x128xbf16>, vector<128x128xbf16>, vector<128x128xf32> -> vector<128x128xf32>
    %10 = arith.addf %6, %9 : vector<128x128xf32>
    %c0_9 = arith.constant 0 : index
    %c0_10 = arith.constant 0 : index
    %11 = vector.load %arg8[%c0_9, %c0_10] : memref<128x128xf32, #tpu.memory_space<vmem>>, vector<128x128xf32>
    tpu.vector_store %arg8[%c0_9, %c0_10], %10 {strides = array<i32>} : memref<128x128xf32, #tpu.memory_space<vmem>>, vector<128x128xf32>,
    %c1_i32 = arith.constant 1 : i32
    %12 = arith.cmpi eq, %arg1, %c1_i32 : i32
    %13 = arith.extui %12 : i1 to i32
    %c0_i32_11 = arith.constant 0 : i32
    %14 = arith.cmpi ne, %13, %c0_i32_11 : i32
    scf.if %14 {
      %c0_12 = arith.constant 0 : index
      %c0_13 = arith.constant 0 : index
      %15 = vector.load %arg8[%c0_12, %c0_13] : memref<128x128xf32, #tpu.memory_space<vmem>>, vector<128x128xf32>
      %c0_14 = arith.constant 0 : index
      %c0_15 = arith.constant 0 : index
      %16 = vector.load %arg6[%c0_14, %c0_15] : memref<128x1xf32, #tpu.memory_space<vmem>>, vector<128x1xf32>
      %17 = vector.broadcast %16 : vector<128x1xf32> to vector<128x128xf32>
      %18 = arith.mulf %15, %17 : vector<128x128xf32>
      %c0_16 = arith.constant 0 : index
      %c0_17 = arith.constant 0 : index
      %19 = vector.load %arg5[%c0_16, %c0_17] : memref<1x128xf32, #tpu.memory_space<vmem>>, vector<1x128xf32>
      %20 = vector.broadcast %19 : vector<1x128xf32> to vector<128x128xf32>
      %21 = arith.addf %18, %20 : vector<128x128xf32>
      %c0_18 = arith.constant 0 : index
      %c0_19 = arith.constant 0 : index
      %22 = vector.load %arg7[%c0_18, %c0_19] : memref<128x128xf32, #tpu.memory_space<vmem>>, vector<128x128xf32>
      tpu.vector_store %arg7[%c0_18, %c0_19], %21 {strides = array<i32>} : memref<128x128xf32, #tpu.memory_space<vmem>>, vector<128x128xf32>,
    } else {
    }
    return
  }
  func.func @transform_0(%arg0: i32, %arg1: i32) -> (i32, i32) {
    %c0_i32 = arith.constant 0 : i32
    return %arg0, %arg1 : i32, i32
  }
  func.func @transform_1(%arg0: i32, %arg1: i32) -> (i32, i32) {
    %c0_i32 = arith.constant 0 : i32
    %c0_i32_0 = arith.constant 0 : i32
    return %arg1, %c0_i32 : i32, i32
  }
  func.func @transform_2(%arg0: i32, %arg1: i32) -> (i32, i32) {
    %c0_i32 = arith.constant 0 : i32
    %c0_i32_0 = arith.constant 0 : i32
    %c0_i32_1 = arith.constant 0 : i32
    return %c0_i32, %c0_i32_0 : i32, i32
  }
  func.func @transform_3(%arg0: i32, %arg1: i32) -> (i32, i32) {
    %c0_i32 = arith.constant 0 : i32
    %c0_i32_0 = arith.constant 0 : i32
    %c0_i32_1 = arith.constant 0 : i32
    return %c0_i32, %c0_i32_0 : i32, i32
  }
  func.func @transform_4(%arg0: i32, %arg1: i32) -> (i32, i32) {
    %c0_i32 = arith.constant 0 : i32
    %c0_i32_0 = arith.constant 0 : i32
    return %arg0, %c0_i32 : i32, i32
  }
  func.func @transform_5(%arg0: i32, %arg1: i32) -> (i32, i32) {
    %c0_i32 = arith.constant 0 : i32
    %c0_i32_0 = arith.constant 0 : i32
    return %arg0, %c0_i32 : i32, i32
  }
}

</mosaic_0001>

<llo_original>
// kernel: gcn_layer_forward.1
$region0: #{gcn_layer_forward.1}
  #allocation0 [shape = 'u32[]', space=smem, size = 0x4, offset = 0x4, fixed_abs, tag = 'smem constant byte address 0x4 - core index']
  #allocation1 [shape = 'u32[144,128]{1,0:T(1,128)}', space=vmem, size = 0x12000, scoped, tag = 'internal scratch']
  #allocation2 [shape = 'f32[128,128]{1,0:T(8,128)}', space=vmem, size = 0x10000, scoped, tag = 'scratch operand']
  %s0 = inlined_call_operand.vmem [shape: bf16[256,256], index: 0, kind: input, shape index: {}]
  %s1 = inlined_call_operand.vmem [shape: bf16[256,16], index: 1, kind: input, shape index: {}]
  %s2 = inlined_call_operand.vmem [shape: bf16[16,128], index: 2, kind: input, shape index: {}]
  %s3 = inlined_call_operand.vmem [shape: f32[1,128], index: 3, kind: input, shape index: {}]
  %s4 = inlined_call_operand.vmem [shape: f32[256,1], index: 4, kind: input, shape index: {}]
  %s5 = inlined_call_operand.hbm [shape: f32[256,128], index: 5, kind: output, shape index: {}]
  %s6 = sld [smem:[#allocation0]]
  $region102: #{gcn_layer_forward.1} parent=0
    _
  %s8 = ssub.s32 1, %s6
  %s9 = scalar_select 0, %s8, %s6
  $region1: #{gcn_layer_forward.1} parent=0
    #allocation3 [shape = 'u8[65536]{0}', space=vmem, size = 0x10000, scoped, tag = 'input window, operand 0']
    #allocation4 [shape = 'u8[131072]{0}', space=vmem, size = 0x20000, scoped, tag = 'output window, operand 0']
    #allocation5 [shape = 's32[2]{0}', space=sflag, size = 0x8, scoped, tag = 'scoped memory for gcn_layer_forward.1']
    %10 = vsyncpa [#allocation5], 0
    %s11 = scalar_lea.sflag [#allocation5], 1
    %12 = vsyncpa %s11, 0
    loop: start=0, step=1, limit=6
    $region2: #{gcn_layer_forward.1} parent=1 // loop_pre_header
      _
    $region3: #{gcn_layer_forward.1} parent=1 // loop_header
      %s14 = sphi 0, %s18
      %p15 = scmp.ge.s32.totalorder %s14, 6
      %s21 = sphi 0, %s33
      %s22 = sphi 0, %s29
      %s23 = sphi 0, %s21
      %s24 = sphi 0, %s22
      %s25 = sphi 0, %s23
      %s26 = sphi 0, %s24
      %s38 = sphi 0, %s40
      %s41 = sphi 0, %s38
      %s42 = sphi 0, %s41
      %s58 = sphi 0, %s42
      %s64 = sphi 0, %s66
      %s67 = sphi 0, %s64
      %s68 = sphi 0, %s67
      %s84 = sphi 0, %s68
      %s88 = sphi 0, %s88
      %s90 = sphi 0, %s88
      %s91 = sphi 0, %s90
      %s105 = sphi 0, %s91
      %s109 = sphi 0, %s109
      %s111 = sphi 0, %s109
      %s112 = sphi 0, %s111
      %s126 = sphi 0, %s112
      %s132 = sphi 0, %s134
      %s135 = sphi 0, %s132
      %s136 = sphi 0, %s135
      %s152 = sphi 0, %s136
      %s158 = sphi 0, %s160
      %s161 = sphi 0, %s158
      %s162 = sphi 0, %s161
      %s178 = sphi 0, %s162
    $region4: #{gcn_layer_forward.1} parent=1 // loop_header_branch
      %17 = sbr.rel (%p15) target = $region8
    $region5: #{gcn_layer_forward.1} parent=1 // loop_body
      %s19 = ssub.s32 %s14, 1
      %s20 = ssub.s32 %s14, 2
      %s27 = sadd.s32 1, %s22
      %p28 = scmp.ge.s32.totalorder %s27, 2
      %s29 = scalar_select %p28, 0, %s27
      %s30 = sadd.s32 1, %s21
      %s31 = scalar_select %p28, %s30, %s21
      %p32 = scmp.ge.s32.totalorder %s31, 2
      %s33 = scalar_select %p32, 0, %s31
      %s34 = ssub.s32 %s21, %s33
      %s35 = ssub.s32 %s22, %s29
      %s36 = sor.u32 %s34, %s35
      %p37 = scmp.eq.s32.totalorder %s36, 0
      %s39 = sadd.s32 %s38, 1
      %s40 = scalar_select %p37, %s38, %s39
      %p43 = pneg %p37
      %p44 = scmp.eq.s32.totalorder %s14, 3
      %p45 = por %p43, %p44
      %p46 = scmp.ne.s32.totalorder %s38, %s41
      %p47 = scmp.eq.s32.totalorder %s14, 0
      %p48 = por %p46, %p47
      %p49 = scmp.ne.s32.totalorder %s38, %s41
      %p50 = scmp.eq.s32.totalorder %s19, 3
      %p51 = por %p49, %p50
      %p52 = scmp.ne.s32.totalorder %s41, %s42
      %p53 = scmp.eq.s32.totalorder %s19, 0
      %p54 = por %p52, %p53
      %p55 = scmp.ne.s32.totalorder %s41, %s42
      %p56 = scmp.eq.s32.totalorder %s20, 3
      %p57 = por %p55, %p56
      %p59 = scmp.ne.s32.totalorder %s42, %s58
      %p60 = scmp.eq.s32.totalorder %s20, 0
      %p61 = por %p59, %p60
      %s62 = ssub.s32 %s22, %s29
      %p63 = scmp.eq.s32.totalorder %s62, 0
      %s65 = sadd.s32 %s64, 1
      %s66 = scalar_select %p63, %s64, %s65
      %p69 = pneg %p63
      %p70 = scmp.eq.s32.totalorder %s14, 3
      %p71 = por %p69, %p70
      %p72 = scmp.ne.s32.totalorder %s64, %s67
      %p73 = scmp.eq.s32.totalorder %s14, 0
      %p74 = por %p72, %p73
      %p75 = scmp.ne.s32.totalorder %s64, %s67
      %p76 = scmp.eq.s32.totalorder %s19, 3
      %p77 = por %p75, %p76
      %p78 = scmp.ne.s32.totalorder %s67, %s68
      %p79 = scmp.eq.s32.totalorder %s19, 0
      %p80 = por %p78, %p79
      %p81 = scmp.ne.s32.totalorder %s67, %s68
      %p82 = scmp.eq.s32.totalorder %s20, 3
      %p83 = por %p81, %p82
      %p85 = scmp.ne.s32.totalorder %s68, %s84
      %p86 = scmp.eq.s32.totalorder %s20, 0
      %p87 = por %p85, %p86
      %s89 = sadd.s32 %s88, 1
      %p92 = scmp.eq.s32.totalorder %s14, 3
      %p93 = scmp.ne.s32.totalorder %s88, %s90
      %p94 = scmp.eq.s32.totalorder %s14, 0
      %p95 = por %p93, %p94
      %p96 = scmp.ne.s32.totalorder %s88, %s90
      %p97 = scmp.eq.s32.totalorder %s19, 3
      %p98 = por %p96, %p97
      %p99 = scmp.ne.s32.totalorder %s90, %s91
      %p100 = scmp.eq.s32.totalorder %s19, 0
      %p101 = por %p99, %p100
      %p102 = scmp.ne.s32.totalorder %s90, %s91
      %p103 = scmp.eq.s32.totalorder %s20, 3
      %p104 = por %p102, %p103
      %p106 = scmp.ne.s32.totalorder %s91, %s105
      %p107 = scmp.eq.s32.totalorder %s20, 0
      %p108 = por %p106, %p107
      %s110 = sadd.s32 %s109, 1
      %p113 = scmp.eq.s32.totalorder %s14, 3
      %p114 = scmp.ne.s32.totalorder %s109, %s111
      %p115 = scmp.eq.s32.totalorder %s14, 0
      %p116 = por %p114, %p115
      %p117 = scmp.ne.s32.totalorder %s109, %s111
      %p118 = scmp.eq.s32.totalorder %s19, 3
      %p119 = por %p117, %p118
      %p120 = scmp.ne.s32.totalorder %s111, %s112
      %p121 = scmp.eq.s32.totalorder %s19, 0
      %p122 = por %p120, %p121
      %p123 = scmp.ne.s32.totalorder %s111, %s112
      %p124 = scmp.eq.s32.totalorder %s20, 3
      %p125 = por %p123, %p124
      %p127 = scmp.ne.s32.totalorder %s112, %s126
      %p128 = scmp.eq.s32.totalorder %s20, 0
      %p129 = por %p127, %p128
      %s130 = ssub.s32 %s21, %s33
      %p131 = scmp.eq.s32.totalorder %s130, 0
      %s133 = sadd.s32 %s132, 1
      %s134 = scalar_select %p131, %s132, %s133
      %p137 = pneg %p131
      %p138 = scmp.eq.s32.totalorder %s14, 3
      %p139 = por %p137, %p138
      %p140 = scmp.ne.s32.totalorder %s132, %s135
      %p141 = scmp.eq.s32.totalorder %s14, 0
      %p142 = por %p140, %p141
      %p143 = scmp.ne.s32.totalorder %s132, %s135
      %p144 = scmp.eq.s32.totalorder %s19, 3
      %p145 = por %p143, %p144
      %p146 = scmp.ne.s32.totalorder %s135, %s136
      %p147 = scmp.eq.s32.totalorder %s19, 0
      %p148 = por %p146, %p147
      %p149 = scmp.ne.s32.totalorder %s135, %s136
      %p150 = scmp.eq.s32.totalorder %s20, 3
      %p151 = por %p149, %p150
      %p153 = scmp.ne.s32.totalorder %s136, %s152
      %p154 = scmp.eq.s32.totalorder %s20, 0
      %p155 = por %p153, %p154
      %s156 = ssub.s32 %s21, %s33
      %p157 = scmp.eq.s32.totalorder %s156, 0
      %s159 = sadd.s32 %s158, 1
      %s160 = scalar_select %p157, %s158, %s159
      %p163 = pneg %p157
      %p164 = scmp.eq.s32.totalorder %s14, 3
      %p165 = por %p163, %p164
      %p166 = scmp.ne.s32.totalorder %s158, %s161
      %p167 = scmp.eq.s32.totalorder %s14, 0
      %p168 = por %p166, %p167
      %p169 = scmp.ne.s32.totalorder %s158, %s161
      %p170 = scmp.eq.s32.totalorder %s19, 3
      %p171 = por %p169, %p170
      %p172 = scmp.ne.s32.totalorder %s161, %s162
      %p173 = scmp.eq.s32.totalorder %s19, 0
      %p174 = por %p172, %p173
      %p175 = scmp.ne.s32.totalorder %s161, %s162
      %p176 = scmp.eq.s32.totalorder %s20, 3
      %p177 = por %p175, %p176
      %p179 = scmp.ne.s32.totalorder %s162, %s178
      %p180 = scmp.eq.s32.totalorder %s20, 0
      %p181 = por %p179, %p180
      %p182 = scmp.le.s32.totalorder 1, %s14
      %p183 = scmp.lt.s32.totalorder %s14, 5
      %p184 = pnand %p182, %p183
      %p185 = pneg %p184
      // Predicated region
      $region9: #{gcn_layer_forward.1} parent=5 // pred_check
        _
      $region10: #{gcn_layer_forward.1} parent=5 // pred_check_branch
        %187 = sbr.rel (%p184) target = $region12
      $region11: #{gcn_layer_forward.1} parent=5 // pred_region
        %s188 = ssub.s32 %s14, 1
        // Predicated region
        $region13: #{gcn_layer_forward.1} parent=11 // pred_check
          %p189 = pneg %p101
        $region14: #{gcn_layer_forward.1} parent=11 // pred_check_branch
          %191 = sbr.rel (%p189) target = $region16
        $region15: #{gcn_layer_forward.1} parent=11 // pred_region
          _
        $region16: #{gcn_layer_forward.1} parent=11 // pred_fallthru
          _
        // Predicated region
        $region17: #{gcn_layer_forward.1} parent=11 // pred_check
          %p192 = pneg %p122
        $region18: #{gcn_layer_forward.1} parent=11 // pred_check_branch
          %194 = sbr.rel (%p192) target = $region20
        $region19: #{gcn_layer_forward.1} parent=11 // pred_region
          _
        $region20: #{gcn_layer_forward.1} parent=11 // pred_fallthru
          _
      $region12: #{gcn_layer_forward.1} parent=5 // pred_fallthru
        _
      %p195 = scmp.lt.s32.totalorder %s14, 4
      // Predicated region
      $region21: #{gcn_layer_forward.1} parent=5 // pred_check
        %p196 = pneg %p195
      $region22: #{gcn_layer_forward.1} parent=5 // pred_check_branch
        %198 = sbr.rel (%p196) target = $region24
      $region23: #{gcn_layer_forward.1} parent=5 // pred_region
        // Predicated region
        $region25: #{gcn_layer_forward.1} parent=23 // pred_check
          %p199 = pneg %p48
        $region26: #{gcn_layer_forward.1} parent=23 // pred_check_branch
          %201 = sbr.rel (%p199) target = $region28
        $region27: #{gcn_layer_forward.1} parent=23 // pred_region
          %s202 = sand.u32 %s38, 1
          %s203 = sand.u32 %s38, 1
          %s204 = smul.addr %s203, 64
          %s205 = scalar_lea.vmem [#allocation3], %s204
          %s206 = smul.u32 16, %s21
          %s207 = smul.addr %s206, 2
          %s208 = sadd.s32 %s22, %s207
          %s209 = smul.addr %s208, 4
          %s210 = scalar_lea.vmem %s0, %s209
          // Predicated region
          $region29: #{gcn_layer_forward.1} parent=27 // pred_check
            _
          $region30: #{gcn_layer_forward.1} parent=27 // pred_check_branch
            %212 = sbr.rel (0) target = $region32
          $region31: #{gcn_layer_forward.1} parent=27 // pred_region
            // Predicated region
            $region33: #{gcn_layer_forward.1} parent=31 // pred_check
              _
            $region34: #{gcn_layer_forward.1} parent=31 // pred_check_branch
              %214 = sbr.rel target = $region36
            $region35: #{gcn_layer_forward.1} parent=31 // pred_region
              // Predicated region
              $region48: #{gcn_layer_forward.1} parent=35 // pred_check
                _
              $region49: #{gcn_layer_forward.1} parent=35 // pred_check_branch
                %260 = sbr.rel (0) target = $region51
              $region50: #{gcn_layer_forward.1} parent=35 // pred_region
                loop: start=0, step=1, limit=1
                $region52: #{gcn_layer_forward.1} parent=50 // loop_pre_header
                  _
                $region53: #{gcn_layer_forward.1} parent=50 // loop_header
                  %s262 = sphi 0, %s266
                  %p263 = scmp.ge.s32.totalorder %s262, 1
                  %s267 = sphi %s210, %s210
                  %s268 = sphi %s205, %s205
                $region54: #{gcn_layer_forward.1} parent=50 // loop_header_branch
                  %265 = sbr.rel (%p263) target = $region58
                $region55: #{gcn_layer_forward.1} parent=50 // loop_body
                  _
                $region56: #{gcn_layer_forward.1} parent=50 // loop_footer
                  %s266 = sadd.s32 1, %s262
                $region57: #{gcn_layer_forward.1} parent=50 // loop_footer_branch
                  %261 = sbr.rel target = $region53
                $region58: #{gcn_layer_forward.1} parent=50 // loop_exit
                  _
                %s270 = ssub.s32 16, 1
                loop: start=0, step=1, limit=1
                $region59: #{gcn_layer_forward.1} parent=50 // loop_pre_header
                  _
                $region60: #{gcn_layer_forward.1} parent=50 // loop_header
                  %s272 = sphi 0, %s276
                  %p273 = scmp.ge.s32.totalorder %s272, 1
                  %s277 = sphi %s210, %s210
                  %s278 = sphi %s205, %s205
                $region61: #{gcn_layer_forward.1} parent=50 // loop_header_branch
                  %275 = sbr.rel (%p273) target = $region65
                $region62: #{gcn_layer_forward.1} parent=50 // loop_body
                  %v279 = vld [vmem:[%s277] sm:%s270]
                  %280 = vst [vmem:[%s278] sm:%s270] %v279
                  %v281 = vld [vmem:[%s277 + $0x8] sm:%s270]
                  %282 = vst [vmem:[%s278 + $0x4] sm:%s270] %v281
                  %v283 = vld [vmem:[%s277 + $0x10] sm:%s270]
                  %284 = vst [vmem:[%s278 + $0x8] sm:%s270] %v283
                  %v285 = vld [vmem:[%s277 + $0x18] sm:%s270]
                  %286 = vst [vmem:[%s278 + $0xc] sm:%s270] %v285
                  %v287 = vld [vmem:[%s277 + $0x20] sm:%s270]
                  %288 = vst [vmem:[%s278 + $0x10] sm:%s270] %v287
                  %v289 = vld [vmem:[%s277 + $0x28] sm:%s270]
                  %290 = vst [vmem:[%s278 + $0x14] sm:%s270] %v289
                  %v291 = vld [vmem:[%s277 + $0x30] sm:%s270]
                  %292 = vst [vmem:[%s278 + $0x18] sm:%s270] %v291
                  %v293 = vld [vmem:[%s277 + $0x38] sm:%s270]
                  %294 = vst [vmem:[%s278 + $0x1c] sm:%s270] %v293
                  %v295 = vld [vmem:[%s277 + $0x40] sm:%s270]
                  %296 = vst [vmem:[%s278 + $0x20] sm:%s270] %v295
                  %v297 = vld [vmem:[%s277 + $0x48] sm:%s270]
                  %298 = vst [vmem:[%s278 + $0x24] sm:%s270] %v297
                  %v299 = vld [vmem:[%s277 + $0x50] sm:%s270]
                  %300 = vst [vmem:[%s278 + $0x28] sm:%s270] %v299
                  %v301 = vld [vmem:[%s277 + $0x58] sm:%s270]
                  %302 = vst [vmem:[%s278 + $0x2c] sm:%s270] %v301
                  %v303 = vld [vmem:[%s277 + $0x60] sm:%s270]
                  %304 = vst [vmem:[%s278 + $0x30] sm:%s270] %v303
                  %v305 = vld [vmem:[%s277 + $0x68] sm:%s270]
                  %306 = vst [vmem:[%s278 + $0x34] sm:%s270] %v305
                  %v307 = vld [vmem:[%s277 + $0x70] sm:%s270]
                  %308 = vst [vmem:[%s278 + $0x38] sm:%s270] %v307
                  %v309 = vld [vmem:[%s277 + $0x78] sm:%s270]
                  %310 = vst [vmem:[%s278 + $0x3c] sm:%s270] %v309
                $region63: #{gcn_layer_forward.1} parent=50 // loop_footer
                  %s276 = sadd.s32 1, %s272
                $region64: #{gcn_layer_forward.1} parent=50 // loop_footer_branch
                  %271 = sbr.rel target = $region60
                $region65: #{gcn_layer_forward.1} parent=50 // loop_exit
                  _
              $region51: #{gcn_layer_forward.1} parent=35 // pred_fallthru
                _
            $region36: #{gcn_layer_forward.1} parent=31 // pred_fallthru
              _
            // Predicated region
            $region37: #{gcn_layer_forward.1} parent=31 // pred_check
              _
            $region38: #{gcn_layer_forward.1} parent=31 // pred_check_branch
              %216 = sbr.rel (0) target = $region40
            $region39: #{gcn_layer_forward.1} parent=31 // pred_region
              %s218 = ssub.s32 16, 1
              loop: start=0, step=1, limit=1
              $region41: #{gcn_layer_forward.1} parent=39 // loop_pre_header
                _
              $region42: #{gcn_layer_forward.1} parent=39 // loop_header
                %s220 = sphi 0, %s224
                %p221 = scmp.ge.s32.totalorder %s220, 1
                %s225 = sphi %s210, %s210
                %s226 = sphi %s205, %s205
              $region43: #{gcn_layer_forward.1} parent=39 // loop_header_branch
                %223 = sbr.rel (%p221) target = $region47
              $region44: #{gcn_layer_forward.1} parent=39 // loop_body
                %v227 = vld [vmem:[%s225] sm:%s218]
                %228 = vst [vmem:[%s226] sm:%s218] %v227
                %v229 = vld [vmem:[%s225 + $0x8] sm:%s218]
                %230 = vst [vmem:[%s226 + $0x4] sm:%s218] %v229
                %v231 = vld [vmem:[%s225 + $0x10] sm:%s218]
                %232 = vst [vmem:[%s226 + $0x8] sm:%s218] %v231
                %v233 = vld [vmem:[%s225 + $0x18] sm:%s218]
                %234 = vst [vmem:[%s226 + $0xc] sm:%s218] %v233
                %v235 = vld [vmem:[%s225 + $0x20] sm:%s218]
                %236 = vst [vmem:[%s226 + $0x10] sm:%s218] %v235
                %v237 = vld [vmem:[%s225 + $0x28] sm:%s218]
                %238 = vst [vmem:[%s226 + $0x14] sm:%s218] %v237
                %v239 = vld [vmem:[%s225 + $0x30] sm:%s218]
                %240 = vst [vmem:[%s226 + $0x18] sm:%s218] %v239
                %v241 = vld [vmem:[%s225 + $0x38] sm:%s218]
                %242 = vst [vmem:[%s226 + $0x1c] sm:%s218] %v241
                %v243 = vld [vmem:[%s225 + $0x40] sm:%s218]
                %244 = vst [vmem:[%s226 + $0x20] sm:%s218] %v243
                %v245 = vld [vmem:[%s225 + $0x48] sm:%s218]
                %246 = vst [vmem:[%s226 + $0x24] sm:%s218] %v245
                %v247 = vld [vmem:[%s225 + $0x50] sm:%s218]
                %248 = vst [vmem:[%s226 + $0x28] sm:%s218] %v247
                %v249 = vld [vmem:[%s225 + $0x58] sm:%s218]
                %250 = vst [vmem:[%s226 + $0x2c] sm:%s218] %v249
                %v251 = vld [vmem:[%s225 + $0x60] sm:%s218]
                %252 = vst [vmem:[%s226 + $0x30] sm:%s218] %v251
                %v253 = vld [vmem:[%s225 + $0x68] sm:%s218]
                %254 = vst [vmem:[%s226 + $0x34] sm:%s218] %v253
                %v255 = vld [vmem:[%s225 + $0x70] sm:%s218]
                %256 = vst [vmem:[%s226 + $0x38] sm:%s218] %v255
                %v257 = vld [vmem:[%s225 + $0x78] sm:%s218]
                %258 = vst [vmem:[%s226 + $0x3c] sm:%s218] %v257
              $region45: #{gcn_layer_forward.1} parent=39 // loop_footer
                %s224 = sadd.s32 1, %s220
              $region46: #{gcn_layer_forward.1} parent=39 // loop_footer_branch
                %219 = sbr.rel target = $region42
              $region47: #{gcn_layer_forward.1} parent=39 // loop_exit
                _
            $region40: #{gcn_layer_forward.1} parent=31 // pred_fallthru
              _
          $region32: #{gcn_layer_forward.1} parent=27 // pred_fallthru
            _
          %311 = vnop
        $region28: #{gcn_layer_forward.1} parent=23 // pred_fallthru
          _
        // Predicated region
        $region66: #{gcn_layer_forward.1} parent=23 // pred_check
          %p312 = pneg %p74
        $region67: #{gcn_layer_forward.1} parent=23 // pred_check_branch
          %314 = sbr.rel (%p312) target = $region69
        $region68: #{gcn_layer_forward.1} parent=23 // pred_region
          %s315 = smul.u32 16, %s22
          %p316 = scmp.lt.s32.totalorder %s315, 31
          %s317 = scalar_select %p316, %s315, 31
          %s318 = smul.addr %s317, 4
          %s319 = scalar_lea.vmem %s1, %s318
          %s320 = smul.u32 16, %s22
        $region69: #{gcn_layer_forward.1} parent=23 // pred_fallthru
          _
        // Predicated region
        $region70: #{gcn_layer_forward.1} parent=23 // pred_check
          %p321 = pneg %p142
        $region71: #{gcn_layer_forward.1} parent=23 // pred_check_branch
          %323 = sbr.rel (%p321) target = $region73
        $region72: #{gcn_layer_forward.1} parent=23 // pred_region
          %s324 = smul.u32 16, %s21
          %p325 = scmp.lt.s32.totalorder %s324, 31
          %s326 = scalar_select %p325, %s324, 31
          %s327 = smul.addr %s326, 8
          %s328 = scalar_lea.vmem %s4, %s327
          %s329 = smul.u32 16, %s21
        $region73: #{gcn_layer_forward.1} parent=23 // pred_fallthru
          _
      $region24: #{gcn_layer_forward.1} parent=5 // pred_fallthru
        _
      %p330 = scmp.le.s32.totalorder 1, %s14
      %p331 = scmp.lt.s32.totalorder %s14, 5
      %p332 = pnand %p330, %p331
      %p333 = pneg %p332
      // Predicated region
      $region74: #{gcn_layer_forward.1} parent=5 // pred_check
        _
      $region75: #{gcn_layer_forward.1} parent=5 // pred_check_branch
        %335 = sbr.rel (%p332) target = $region77
      $region76: #{gcn_layer_forward.1} parent=5 // pred_region
        %s336 = ssub.s32 %s14, 1
        %s337 = sand.u32 %s41, 1
        %s338 = sand.u32 %s41, 1
        %s339 = smul.addr %s338, 64
        %s340 = scalar_lea.vmem [#allocation3], %s339
        // Predicated region
        $region78: #{gcn_layer_forward.1} parent=76 // pred_check
          %p341 = pneg %p54
        $region79: #{gcn_layer_forward.1} parent=76 // pred_check_branch
          %343 = sbr.rel (%p341) target = $region81
        $region80: #{gcn_layer_forward.1} parent=76 // pred_region
          _
        $region81: #{gcn_layer_forward.1} parent=76 // pred_fallthru
          _
        %s344 = sand.u32 %s41, 1
        %s345 = sand.u32 %s41, 1
        %s346 = smul.addr %s345, 64
        %s347 = scalar_lea.vmem [#allocation3], %s346
        %p348 = pneg %p54
        %p349 = pneg %p51
        %s350 = smul.u32 16, %s24
        %p351 = scmp.lt.s32.totalorder %s350, 31
        %s352 = scalar_select %p351, %s350, 31
        %s353 = smul.addr %s352, 4
        %s354 = scalar_lea.vmem %s1, %s353
        %p355 = pneg %p80
        %p356 = pneg %p77
        %p357 = pneg %p101
        %p358 = pneg %p98
        %p359 = pneg %p122
        %p360 = pneg %p119
        %s361 = smul.u32 16, %s23
        %p362 = scmp.lt.s32.totalorder %s361, 31
        %s363 = scalar_select %p362, %s361, 31
        %s364 = smul.addr %s363, 8
        %s365 = scalar_lea.vmem %s4, %s364
        %p366 = pneg %p148
        %p367 = pneg %p145
        %p368 = pneg %p174
        %p369 = pneg %p171
        %s370 = sand.u32 %s161, 1
        %s371 = scalar_lea.sflag [#allocation5], %s370
        %s372 = sand.u32 %s161, 1
        %s373 = smul.addr %s372, 128
        %s374 = scalar_lea.vmem [#allocation4], %s373
        %s375 = smul.u32 16, %s23
        %s376 = smul.u32 16, %s24
        %p377 = scmp.lt.s32.totalorder %s376, 31
        %s378 = scalar_select %p377, %s376, 31
        %s379 = smul.addr %s378, 4
        %s380 = scalar_lea.vmem %s1, %s379
        %s381 = smul.u32 16, %s24
        %s382 = smul.u32 16, %s23
        %p383 = scmp.lt.s32.totalorder %s382, 31
        %s384 = scalar_select %p383, %s382, 31
        %s385 = smul.addr %s384, 8
        %s386 = scalar_lea.vmem %s4, %s385
        %s387 = smul.u32 16, %s23
        %s388 = smul.u32 16, %s23
        %p390 = scmp.eq.s32.totalorder %s24, 0
        // Predicated region
        $region82: #{gcn_layer_forward.1} parent=76 // pred_check
          %p391 = pneg %p390
        $region83: #{gcn_layer_forward.1} parent=76 // pred_check_branch
          %393 = sbr.rel (%p391) target = $region85
        $region84: #{gcn_layer_forward.1} parent=76 // pred_region
          %394 = vst [vmem:[#allocation2] sm:$0xff] 0.0
          %395 = vst [vmem:[#allocation2 + $0x8] sm:$0xff] 0.0
          %396 = vst [vmem:[#allocation2 + $0x10] sm:$0xff] 0.0
          %397 = vst [vmem:[#allocation2 + $0x18] sm:$0xff] 0.0
          %398 = vst [vmem:[#allocation2 + $0x20] sm:$0xff] 0.0
          %399 = vst [vmem:[#allocation2 + $0x28] sm:$0xff] 0.0
          %400 = vst [vmem:[#allocation2 + $0x30] sm:$0xff] 0.0
          %401 = vst [vmem:[#allocation2 + $0x38] sm:$0xff] 0.0
          %402 = vst [vmem:[#allocation2 + $0x40] sm:$0xff] 0.0
          %403 = vst [vmem:[#allocation2 + $0x48] sm:$0xff] 0.0
          %404 = vst [vmem:[#allocation2 + $0x50] sm:$0xff] 0.0
          %405 = vst [vmem:[#allocation2 + $0x58] sm:$0xff] 0.0
          %406 = vst [vmem:[#allocation2 + $0x60] sm:$0xff] 0.0
          %407 = vst [vmem:[#allocation2 + $0x68] sm:$0xff] 0.0
          %408 = vst [vmem:[#allocation2 + $0x70] sm:$0xff] 0.0
          %409 = vst [vmem:[#allocation2 + $0x78] sm:$0xff] 0.0
        $region85: #{gcn_layer_forward.1} parent=76 // pred_fallthru
          _
        %v410 = vld [vmem:[%s380] sm:$0xf]
        %v411 = vld [vmem:[%s380 + $0x4] sm:$0xf]
        %v412 = vld [vmem:[%s380 + $0x8] sm:$0xf]
        %v413 = vld [vmem:[%s380 + $0xc] sm:$0xf]
        %v414 = vld [vmem:[%s380 + $0x10] sm:$0xf]
        %v415 = vld [vmem:[%s380 + $0x14] sm:$0xf]
        %v416 = vld [vmem:[%s380 + $0x18] sm:$0xf]
        %v417 = vld [vmem:[%s380 + $0x1c] sm:$0xf]
        %v418 = vld [vmem:[%s380 + $0x20] sm:$0xf]
        %v419 = vld [vmem:[%s380 + $0x24] sm:$0xf]
        %v420 = vld [vmem:[%s380 + $0x28] sm:$0xf]
        %v421 = vld [vmem:[%s380 + $0x2c] sm:$0xf]
        %v422 = vld [vmem:[%s380 + $0x30] sm:$0xf]
        %v423 = vld [vmem:[%s380 + $0x34] sm:$0xf]
        %v424 = vld [vmem:[%s380 + $0x38] sm:$0xf]
        %v425 = vld [vmem:[%s380 + $0x3c] sm:$0xf]
        %v426 = vld [vmem:[%s2] sm:$0xf]
        %v427 = vld [vmem:[%s2 + $0x4] sm:$0xf]
        %v444 = vunpack.c.l.b16 %v410
        %v445 = vunpack.c.l.b16 %v411
        %v446 = vunpack.c.l.b16 %v412
        %v447 = vunpack.c.l.b16 %v413
        %v448 = vunpack.c.l.b16 %v414
        %v449 = vunpack.c.l.b16 %v415
        %v450 = vunpack.c.l.b16 %v416
        %v451 = vunpack.c.l.b16 %v417
        %v452 = vunpack.c.l.b16 %v418
        %v453 = vunpack.c.l.b16 %v419
        %v454 = vunpack.c.l.b16 %v420
        %v455 = vunpack.c.l.b16 %v421
        %v456 = vunpack.c.l.b16 %v422
        %v457 = vunpack.c.l.b16 %v423
        %v458 = vunpack.c.l.b16 %v424
        %v459 = vunpack.c.l.b16 %v425
        %v460 = vpack.c.b16 %v445, %v444
        %v461 = vpack.c.b16 %v447, %v446
        %v462 = vpack.c.b16 %v449, %v448
        %v463 = vpack.c.b16 %v451, %v450
        %v464 = vpack.c.b16 %v453, %v452
        %v465 = vpack.c.b16 %v455, %v454
        %v466 = vpack.c.b16 %v457, %v456
        %v467 = vpack.c.b16 %v459, %v458
        %v470 = vunpack.c.l.b16 %v426
        %v471 = vunpack.c.l.b16 %v427
        %v472 = vpack.c.b16 %v471, %v470
        %vm474 = vcmask 130048
        %v476 = vsel %vm474, %v460, 0
        %v479 = vsel %vm474, %v461, 0
        %v482 = vsel %vm474, %v462, 0
        %v485 = vsel %vm474, %v463, 0
        %v488 = vsel %vm474, %v464, 0
        %v491 = vsel %vm474, %v465, 0
        %v494 = vsel %vm474, %v466, 0
        %v497 = vsel %vm474, %v467, 0
        %499 = vmatprep.subr.bf16.mxu0 0
        %500 = vmatpush1.bf16.msra.mxu0 0
        %501 = vmatprep.subr.bf16.mxu0 0
        %502 = vmatpush1.bf16.msra.mxu0 0
        %503 = vmatprep.subr.bf16.mxu0 0
        %504 = vmatpush1.bf16.msra.mxu0 0
        %505 = vmatprep.subr.bf16.mxu0 0
        %506 = vmatpush1.bf16.msra.mxu0 0
        %507 = vmatprep.subr.bf16.mxu0 0
        %508 = vmatpush1.bf16.msra.mxu0 0
        %509 = vmatprep.subr.bf16.mxu0 0
        %510 = vmatpush1.bf16.msra.mxu0 0
        %511 = vmatprep.subr.bf16.mxu0 0
        %512 = vmatpush1.bf16.msra.mxu0 0
        %513 = vmatprep.subr.bf16.mxu0 0
        %514 = vmatpush1.bf16.msra.mxu0 %v472
        %515 = vmatprep.subr.bf16.mxu0 0
        %516 = vmatpush2.bf16.msra.mxu0 0
        %517 = vmatprep.subr.bf16.mxu0 0
        %518 = vmatpush2.bf16.msra.mxu0 0
        %519 = vmatprep.subr.bf16.mxu0 0
        %520 = vmatpush2.bf16.msra.mxu0 0
        %521 = vmatprep.subr.bf16.mxu0 0
        %522 = vmatpush2.bf16.msra.mxu0 0
        %523 = vmatprep.subr.bf16.mxu0 0
        %524 = vmatpush2.bf16.msra.mxu0 0
        %525 = vmatprep.subr.bf16.mxu0 0
        %526 = vmatpush2.bf16.msra.mxu0 0
        %527 = vmatprep.subr.bf16.mxu0 0
        %528 = vmatpush2.bf16.msra.mxu0 0
        %529 = vmatprep.subr.bf16.mxu0 0
        %530 = vmatpush2.bf16.msra.mxu0 0
        %531 = vmatprep.mubr.bf16.mxu0 0
        %532 = vmatmul.mubr.bf16.gmra.mxu0 %v476
        %v533 = vpop.f32.mrf.mxu0
        %v534 = vadd.f32 0.0, %v533
        %v535 = vpop.f32.mrf.mxu0
        %v536 = vpop.f32.mrf.mxu0
        %v537 = vadd.f32 0.0, %v536
        %v538 = vpop.f32.mrf.mxu0
        %539 = vmatprep.mubr.bf16.mxu0 0
        %540 = vmatmul.mubr.bf16.gmra.mxu0 %v479
        %v541 = vpop.f32.mrf.mxu0
        %v542 = vadd.f32 0.0, %v541
        %v543 = vpop.f32.mrf.mxu0
        %v544 = vpop.f32.mrf.mxu0
        %v545 = vadd.f32 0.0, %v544
        %v546 = vpop.f32.mrf.mxu0
        %547 = vmatprep.mubr.bf16.mxu0 0
        %548 = vmatmul.mubr.bf16.gmra.mxu0 %v482
        %v549 = vpop.f32.mrf.mxu0
        %v550 = vadd.f32 0.0, %v549
        %v551 = vpop.f32.mrf.mxu0
        %v552 = vpop.f32.mrf.mxu0
        %v553 = vadd.f32 0.0, %v552
        %v554 = vpop.f32.mrf.mxu0
        %555 = vmatprep.mubr.bf16.mxu0 0
        %556 = vmatmul.mubr.bf16.gmra.mxu0 %v485
        %v557 = vpop.f32.mrf.mxu0
        %v558 = vadd.f32 0.0, %v557
        %v559 = vpop.f32.mrf.mxu0
        %v560 = vpop.f32.mrf.mxu0
        %v561 = vadd.f32 0.0, %v560
        %v562 = vpop.f32.mrf.mxu0
        %563 = vmatprep.mubr.bf16.mxu0 0
        %564 = vmatmul.mubr.bf16.gmra.mxu0 %v488
        %v565 = vpop.f32.mrf.mxu0
        %v566 = vadd.f32 0.0, %v565
        %v567 = vpop.f32.mrf.mxu0
        %v568 = vpop.f32.mrf.mxu0
        %v569 = vadd.f32 0.0, %v568
        %v570 = vpop.f32.mrf.mxu0
        %571 = vmatprep.mubr.bf16.mxu0 0
        %572 = vmatmul.mubr.bf16.gmra.mxu0 %v491
        %v573 = vpop.f32.mrf.mxu0
        %v574 = vadd.f32 0.0, %v573
        %v575 = vpop.f32.mrf.mxu0
        %v576 = vpop.f32.mrf.mxu0
        %v577 = vadd.f32 0.0, %v576
        %v578 = vpop.f32.mrf.mxu0
        %579 = vmatprep.mubr.bf16.mxu0 0
        %580 = vmatmul.mubr.bf16.gmra.mxu0 %v494
        %v581 = vpop.f32.mrf.mxu0
        %v582 = vadd.f32 0.0, %v581
        %v583 = vpop.f32.mrf.mxu0
        %v584 = vpop.f32.mrf.mxu0
        %v585 = vadd.f32 0.0, %v584
        %v586 = vpop.f32.mrf.mxu0
        %587 = vmatprep.mubr.bf16.mxu0 0
        %588 = vmatmul.mubr.bf16.gmra.mxu0 %v497
        %v589 = vpop.f32.mrf.mxu0
        %v590 = vadd.f32 0.0, %v589
        %v591 = vpop.f32.mrf.mxu0
        %v592 = vpop.f32.mrf.mxu0
        %v593 = vadd.f32 0.0, %v592
        %v594 = vpop.f32.mrf.mxu0
        %595 = vdwg.mxu0
        %v596 = vld [vmem:[#allocation2] sm:$0xff]
        %v597 = vld [vmem:[#allocation2 + $0x8] sm:$0xff]
        %v598 = vld [vmem:[#allocation2 + $0x10] sm:$0xff]
        %v599 = vld [vmem:[#allocation2 + $0x18] sm:$0xff]
        %v600 = vld [vmem:[#allocation2 + $0x20] sm:$0xff]
        %v601 = vld [vmem:[#allocation2 + $0x28] sm:$0xff]
        %v602 = vld [vmem:[#allocation2 + $0x30] sm:$0xff]
        %v603 = vld [vmem:[#allocation2 + $0x38] sm:$0xff]
        %v604 = vld [vmem:[#allocation2 + $0x40] sm:$0xff]
        %v605 = vld [vmem:[#allocation2 + $0x48] sm:$0xff]
        %v606 = vld [vmem:[#allocation2 + $0x50] sm:$0xff]
        %v607 = vld [vmem:[#allocation2 + $0x58] sm:$0xff]
        %v608 = vld [vmem:[#allocation2 + $0x60] sm:$0xff]
        %v609 = vld [vmem:[#allocation2 + $0x68] sm:$0xff]
        %v610 = vld [vmem:[#allocation2 + $0x70] sm:$0xff]
        %v611 = vld [vmem:[#allocation2 + $0x78] sm:$0xff]
        %v612 = vld [vmem:[%s340] sm:$0xf]
        %v613 = vld [vmem:[%s340 + $0x4] sm:$0xf]
        %v614 = vld [vmem:[%s340 + $0x8] sm:$0xf]
        %v615 = vld [vmem:[%s340 + $0xc] sm:$0xf]
        %v616 = vld [vmem:[%s340 + $0x10] sm:$0xf]
        %v617 = vld [vmem:[%s340 + $0x14] sm:$0xf]
        %v618 = vld [vmem:[%s340 + $0x18] sm:$0xf]
        %v619 = vld [vmem:[%s340 + $0x1c] sm:$0xf]
        %v620 = vld [vmem:[%s340 + $0x20] sm:$0xf]
        %v621 = vld [vmem:[%s340 + $0x24] sm:$0xf]
        %v622 = vld [vmem:[%s340 + $0x28] sm:$0xf]
        %v623 = vld [vmem:[%s340 + $0x2c] sm:$0xf]
        %v624 = vld [vmem:[%s340 + $0x30] sm:$0xf]
        %v625 = vld [vmem:[%s340 + $0x34] sm:$0xf]
        %v626 = vld [vmem:[%s340 + $0x38] sm:$0xf]
        %v627 = vld [vmem:[%s340 + $0x3c] sm:$0xf]
        %v628 = vpack.c.bf16 %v537, %v534
        %v629 = vpack.c.bf16 %v545, %v542
        %v630 = vpack.c.bf16 %v553, %v550
        %v631 = vpack.c.bf16 %v561, %v558
        %v632 = vpack.c.bf16 %v569, %v566
        %v633 = vpack.c.bf16 %v577, %v574
        %v634 = vpack.c.bf16 %v585, %v582
        %v635 = vpack.c.bf16 %v593, %v590
        %v652 = vunpack.c.l.b16 %v612
        %v653 = vunpack.c.l.b16 %v613
        %v654 = vunpack.c.l.b16 %v614
        %v655 = vunpack.c.l.b16 %v615
        %v656 = vunpack.c.l.b16 %v616
        %v657 = vunpack.c.l.b16 %v617
        %v658 = vunpack.c.l.b16 %v618
        %v659 = vunpack.c.l.b16 %v619
        %v660 = vunpack.c.l.b16 %v620
        %v661 = vunpack.c.l.b16 %v621
        %v662 = vunpack.c.l.b16 %v622
        %v663 = vunpack.c.l.b16 %v623
        %v664 = vunpack.c.l.b16 %v624
        %v665 = vunpack.c.l.b16 %v625
        %v666 = vunpack.c.l.b16 %v626
        %v667 = vunpack.c.l.b16 %v627
        %v668 = vpack.c.b16 %v653, %v652
        %v669 = vpack.c.b16 %v655, %v654
        %v670 = vpack.c.b16 %v657, %v656
        %v671 = vpack.c.b16 %v659, %v658
        %v672 = vpack.c.b16 %v661, %v660
        %v673 = vpack.c.b16 %v663, %v662
        %v674 = vpack.c.b16 %v665, %v664
        %v675 = vpack.c.b16 %v667, %v666
        %684 = vmatprep.subr.bf16.mxu0 0
        %685 = vmatpush1.bf16.msra.mxu0 %v635
        %686 = vmatprep.subr.bf16.mxu0 0
        %687 = vmatpush1.bf16.msra.mxu0 %v634
        %688 = vmatprep.subr.bf16.mxu0 0
        %689 = vmatpush1.bf16.msra.mxu0 %v633
        %690 = vmatprep.subr.bf16.mxu0 0
        %691 = vmatpush1.bf16.msra.mxu0 %v632
        %692 = vmatprep.subr.bf16.mxu0 0
        %693 = vmatpush1.bf16.msra.mxu0 %v631
        %694 = vmatprep.subr.bf16.mxu0 0
        %695 = vmatpush1.bf16.msra.mxu0 %v630
        %696 = vmatprep.subr.bf16.mxu0 0
        %697 = vmatpush1.bf16.msra.mxu0 %v629
        %698 = vmatprep.subr.bf16.mxu0 0
        %699 = vmatpush1.bf16.msra.mxu0 %v628
        %700 = vmatprep.subr.bf16.mxu0 0
        %701 = vmatpush2.bf16.msra.mxu0 0
        %702 = vmatprep.subr.bf16.mxu0 0
        %703 = vmatpush2.bf16.msra.mxu0 0
        %704 = vmatprep.subr.bf16.mxu0 0
        %705 = vmatpush2.bf16.msra.mxu0 0
        %706 = vmatprep.subr.bf16.mxu0 0
        %707 = vmatpush2.bf16.msra.mxu0 0
        %708 = vmatprep.subr.bf16.mxu0 0
        %709 = vmatpush2.bf16.msra.mxu0 0
        %710 = vmatprep.subr.bf16.mxu0 0
        %711 = vmatpush2.bf16.msra.mxu0 0
        %712 = vmatprep.subr.bf16.mxu0 0
        %713 = vmatpush2.bf16.msra.mxu0 0
        %714 = vmatprep.subr.bf16.mxu0 0
        %715 = vmatpush2.bf16.msra.mxu0 0
        %716 = vmatprep.mubr.bf16.mxu0 0
        %717 = vmatmul.mubr.bf16.gmra.mxu0 %v668
        %v718 = vpop.f32.mrf.mxu0
        %v719 = vadd.f32 0.0, %v718
        %v720 = vpop.f32.mrf.mxu0
        %v721 = vpop.f32.mrf.mxu0
        %v722 = vadd.f32 0.0, %v721
        %v723 = vpop.f32.mrf.mxu0
        %724 = vmatprep.mubr.bf16.mxu0 0
        %725 = vmatmul.mubr.bf16.gmra.mxu0 %v669
        %v726 = vpop.f32.mrf.mxu0
        %v727 = vadd.f32 0.0, %v726
        %v728 = vpop.f32.mrf.mxu0
        %v729 = vpop.f32.mrf.mxu0
        %v730 = vadd.f32 0.0, %v729
        %v731 = vpop.f32.mrf.mxu0
        %732 = vmatprep.mubr.bf16.mxu0 0
        %733 = vmatmul.mubr.bf16.gmra.mxu0 %v670
        %v734 = vpop.f32.mrf.mxu0
        %v735 = vadd.f32 0.0, %v734
        %v736 = vpop.f32.mrf.mxu0
        %v737 = vpop.f32.mrf.mxu0
        %v738 = vadd.f32 0.0, %v737
        %v739 = vpop.f32.mrf.mxu0
        %740 = vmatprep.mubr.bf16.mxu0 0
        %741 = vmatmul.mubr.bf16.gmra.mxu0 %v671
        %v742 = vpop.f32.mrf.mxu0
        %v743 = vadd.f32 0.0, %v742
        %v744 = vpop.f32.mrf.mxu0
        %v745 = vpop.f32.mrf.mxu0
        %v746 = vadd.f32 0.0, %v745
        %v747 = vpop.f32.mrf.mxu0
        %748 = vmatprep.mubr.bf16.mxu0 0
        %749 = vmatmul.mubr.bf16.gmra.mxu0 %v672
        %v750 = vpop.f32.mrf.mxu0
        %v751 = vadd.f32 0.0, %v750
        %v752 = vpop.f32.mrf.mxu0
        %v753 = vpop.f32.mrf.mxu0
        %v754 = vadd.f32 0.0, %v753
        %v755 = vpop.f32.mrf.mxu0
        %756 = vmatprep.mubr.bf16.mxu0 0
        %757 = vmatmul.mubr.bf16.gmra.mxu0 %v673
        %v758 = vpop.f32.mrf.mxu0
        %v759 = vadd.f32 0.0, %v758
        %v760 = vpop.f32.mrf.mxu0
        %v761 = vpop.f32.mrf.mxu0
        %v762 = vadd.f32 0.0, %v761
        %v763 = vpop.f32.mrf.mxu0
        %764 = vmatprep.mubr.bf16.mxu0 0
        %765 = vmatmul.mubr.bf16.gmra.mxu0 %v674
        %v766 = vpop.f32.mrf.mxu0
        %v767 = vadd.f32 0.0, %v766
        %v768 = vpop.f32.mrf.mxu0
        %v769 = vpop.f32.mrf.mxu0
        %v770 = vadd.f32 0.0, %v769
        %v771 = vpop.f32.mrf.mxu0
        %772 = vmatprep.mubr.bf16.mxu0 0
        %773 = vmatmul.mubr.bf16.gmra.mxu0 %v675
        %v774 = vpop.f32.mrf.mxu0
        %v775 = vadd.f32 0.0, %v774
        %v776 = vpop.f32.mrf.mxu0
        %v777 = vpop.f32.mrf.mxu0
        %v778 = vadd.f32 0.0, %v777
        %v779 = vpop.f32.mrf.mxu0
        %780 = vdwg.mxu0
        %v781 = vadd.f32 %v596, %v719
        %v782 = vadd.f32 %v597, %v722
        %v783 = vadd.f32 %v598, %v727
        %v784 = vadd.f32 %v599, %v730
        %v785 = vadd.f32 %v600, %v735
        %v786 = vadd.f32 %v601, %v738
        %v787 = vadd.f32 %v602, %v743
        %v788 = vadd.f32 %v603, %v746
        %v789 = vadd.f32 %v604, %v751
        %v790 = vadd.f32 %v605, %v754
        %v791 = vadd.f32 %v606, %v759
        %v792 = vadd.f32 %v607, %v762
        %v793 = vadd.f32 %v608, %v767
        %v794 = vadd.f32 %v609, %v770
        %v795 = vadd.f32 %v610, %v775
        %v796 = vadd.f32 %v611, %v778
        %797 = vst [vmem:[#allocation2] sm:$0xff] %v781
        %798 = vst [vmem:[#allocation2 + $0x8] sm:$0xff] %v782
        %799 = vst [vmem:[#allocation2 + $0x10] sm:$0xff] %v783
        %800 = vst [vmem:[#allocation2 + $0x18] sm:$0xff] %v784
        %801 = vst [vmem:[#allocation2 + $0x20] sm:$0xff] %v785
        %802 = vst [vmem:[#allocation2 + $0x28] sm:$0xff] %v786
        %803 = vst [vmem:[#allocation2 + $0x30] sm:$0xff] %v787
        %804 = vst [vmem:[#allocation2 + $0x38] sm:$0xff] %v788
        %805 = vst [vmem:[#allocation2 + $0x40] sm:$0xff] %v789
        %806 = vst [vmem:[#allocation2 + $0x48] sm:$0xff] %v790
        %807 = vst [vmem:[#allocation2 + $0x50] sm:$0xff] %v791
        %808 = vst [vmem:[#allocation2 + $0x58] sm:$0xff] %v792
        %809 = vst [vmem:[#allocation2 + $0x60] sm:$0xff] %v793
        %810 = vst [vmem:[#allocation2 + $0x68] sm:$0xff] %v794
        %811 = vst [vmem:[#allocation2 + $0x70] sm:$0xff] %v795
        %812 = vst [vmem:[#allocation2 + $0x78] sm:$0xff] %v796
        %p813 = scmp.eq.s32.totalorder %s24, 1
        // Predicated region
        $region86: #{gcn_layer_forward.1} parent=76 // pred_check
          %p814 = pneg %p813
        $region87: #{gcn_layer_forward.1} parent=76 // pred_check_branch
          %816 = sbr.rel (%p814) target = $region89
        $region88: #{gcn_layer_forward.1} parent=76 // pred_region
          %v817 = vld [vmem:[#allocation2] sm:$0xff]
          %v818 = vld [vmem:[#allocation2 + $0x8] sm:$0xff]
          %v819 = vld [vmem:[#allocation2 + $0x10] sm:$0xff]
          %v820 = vld [vmem:[#allocation2 + $0x18] sm:$0xff]
          %v821 = vld [vmem:[#allocation2 + $0x20] sm:$0xff]
          %v822 = vld [vmem:[#allocation2 + $0x28] sm:$0xff]
          %v823 = vld [vmem:[#allocation2 + $0x30] sm:$0xff]
          %v824 = vld [vmem:[#allocation2 + $0x38] sm:$0xff]
          %v825 = vld [vmem:[#allocation2 + $0x40] sm:$0xff]
          %v826 = vld [vmem:[#allocation2 + $0x48] sm:$0xff]
          %v827 = vld [vmem:[#allocation2 + $0x50] sm:$0xff]
          %v828 = vld [vmem:[#allocation2 + $0x58] sm:$0xff]
          %v829 = vld [vmem:[#allocation2 + $0x60] sm:$0xff]
          %v830 = vld [vmem:[#allocation2 + $0x68] sm:$0xff]
          %v831 = vld [vmem:[#allocation2 + $0x70] sm:$0xff]
          %v832 = vld [vmem:[#allocation2 + $0x78] sm:$0xff]
          %v833 = vld [vmem:[%s386] sm:$0xff]
          %v834 = vld [vmem:[%s386 + $0x8] sm:$0xff]
          %v835 = vld [vmem:[%s386 + $0x10] sm:$0xff]
          %v836 = vld [vmem:[%s386 + $0x18] sm:$0xff]
          %v837 = vld [vmem:[%s386 + $0x20] sm:$0xff]
          %v838 = vld [vmem:[%s386 + $0x28] sm:$0xff]
          %v839 = vld [vmem:[%s386 + $0x30] sm:$0xff]
          %v840 = vld [vmem:[%s386 + $0x38] sm:$0xff]
          %v841 = vld [vmem:[%s386 + $0x40] sm:$0xff]
          %v842 = vld [vmem:[%s386 + $0x48] sm:$0xff]
          %v843 = vld [vmem:[%s386 + $0x50] sm:$0xff]
          %v844 = vld [vmem:[%s386 + $0x58] sm:$0xff]
          %v845 = vld [vmem:[%s386 + $0x60] sm:$0xff]
          %v846 = vld [vmem:[%s386 + $0x68] sm:$0xff]
          %v847 = vld [vmem:[%s386 + $0x70] sm:$0xff]
          %v848 = vld [vmem:[%s386 + $0x78] sm:$0xff]
          %850 = vset.pattern.permute.xlu0 0
          %851 = vperm.xlu0 %850, %v833
          %v852 = vpop.permute.xlu0 %851
          %855 = vset.pattern.permute.xlu0 0
          %856 = vperm.xlu0 %855, %v834
          %v857 = vpop.permute.xlu0 %856
          %860 = vset.pattern.permute.xlu0 0
          %861 = vperm.xlu0 %860, %v835
          %v862 = vpop.permute.xlu0 %861
          %865 = vset.pattern.permute.xlu0 0
          %866 = vperm.xlu0 %865, %v836
          %v867 = vpop.permute.xlu0 %866
          %870 = vset.pattern.permute.xlu0 0
          %871 = vperm.xlu0 %870, %v837
          %v872 = vpop.permute.xlu0 %871
          %875 = vset.pattern.permute.xlu0 0
          %876 = vperm.xlu0 %875, %v838
          %v877 = vpop.permute.xlu0 %876
          %880 = vset.pattern.permute.xlu0 0
          %881 = vperm.xlu0 %880, %v839
          %v882 = vpop.permute.xlu0 %881
          %885 = vset.pattern.permute.xlu0 0
          %886 = vperm.xlu0 %885, %v840
          %v887 = vpop.permute.xlu0 %886
          %890 = vset.pattern.permute.xlu0 0
          %891 = vperm.xlu0 %890, %v841
          %v892 = vpop.permute.xlu0 %891
          %895 = vset.pattern.permute.xlu0 0
          %896 = vperm.xlu0 %895, %v842
          %v897 = vpop.permute.xlu0 %896
          %900 = vset.pattern.permute.xlu0 0
          %901 = vperm.xlu0 %900, %v843
          %v902 = vpop.permute.xlu0 %901
          %905 = vset.pattern.permute.xlu0 0
          %906 = vperm.xlu0 %905, %v844
          %v907 = vpop.permute.xlu0 %906
          %910 = vset.pattern.permute.xlu0 0
          %911 = vperm.xlu0 %910, %v845
          %v912 = vpop.permute.xlu0 %911
          %915 = vset.pattern.permute.xlu0 0
          %916 = vperm.xlu0 %915, %v846
          %v917 = vpop.permute.xlu0 %916
          %920 = vset.pattern.permute.xlu0 0
          %921 = vperm.xlu0 %920, %v847
          %v922 = vpop.permute.xlu0 %921
          %925 = vset.pattern.permute.xlu0 0
          %926 = vperm.xlu0 %925, %v848
          %v927 = vpop.permute.xlu0 %926
          %v929 = vmul.f32 %v817, %v852
          %v930 = vmul.f32 %v818, %v857
          %v931 = vmul.f32 %v819, %v862
          %v932 = vmul.f32 %v820, %v867
          %v933 = vmul.f32 %v821, %v872
          %v934 = vmul.f32 %v822, %v877
          %v935 = vmul.f32 %v823, %v882
          %v936 = vmul.f32 %v824, %v887
          %v937 = vmul.f32 %v825, %v892
          %v938 = vmul.f32 %v826, %v897
          %v939 = vmul.f32 %v827, %v902
          %v940 = vmul.f32 %v828, %v907
          %v941 = vmul.f32 %v829, %v912
          %v942 = vmul.f32 %v830, %v917
          %v943 = vmul.f32 %v831, %v922
          %v944 = vmul.f32 %v832, %v927
          %v945 = vld [vmem:[%s3] sm:$0x1]
          %v947 = vlaneseq
          %v948 = vshrl.u32 %v947, 7
          %v949 = vsub.s32 0, %v948
          %v950 = vrot.slane %v945, %v949
          %v952 = vadd.f32 %v929, %v950
          %v953 = vadd.f32 %v930, %v950
          %v954 = vadd.f32 %v931, %v950
          %v955 = vadd.f32 %v932, %v950
          %v956 = vadd.f32 %v933, %v950
          %v957 = vadd.f32 %v934, %v950
          %v958 = vadd.f32 %v935, %v950
          %v959 = vadd.f32 %v936, %v950
          %v960 = vadd.f32 %v937, %v950
          %v961 = vadd.f32 %v938, %v950
          %v962 = vadd.f32 %v939, %v950
          %v963 = vadd.f32 %v940, %v950
          %v964 = vadd.f32 %v941, %v950
          %v965 = vadd.f32 %v942, %v950
          %v966 = vadd.f32 %v943, %v950
          %v967 = vadd.f32 %v944, %v950
          %968 = vst [vmem:[%s374] sm:$0xff] %v952
          %969 = vst [vmem:[%s374 + $0x8] sm:$0xff] %v953
          %970 = vst [vmem:[%s374 + $0x10] sm:$0xff] %v954
          %971 = vst [vmem:[%s374 + $0x18] sm:$0xff] %v955
          %972 = vst [vmem:[%s374 + $0x20] sm:$0xff] %v956
          %973 = vst [vmem:[%s374 + $0x28] sm:$0xff] %v957
          %974 = vst [vmem:[%s374 + $0x30] sm:$0xff] %v958
          %975 = vst [vmem:[%s374 + $0x38] sm:$0xff] %v959
          %976 = vst [vmem:[%s374 + $0x40] sm:$0xff] %v960
          %977 = vst [vmem:[%s374 + $0x48] sm:$0xff] %v961
          %978 = vst [vmem:[%s374 + $0x50] sm:$0xff] %v962
          %979 = vst [vmem:[%s374 + $0x58] sm:$0xff] %v963
          %980 = vst [vmem:[%s374 + $0x60] sm:$0xff] %v964
          %981 = vst [vmem:[%s374 + $0x68] sm:$0xff] %v965
          %982 = vst [vmem:[%s374 + $0x70] sm:$0xff] %v966
          %983 = vst [vmem:[%s374 + $0x78] sm:$0xff] %v967
        $region89: #{gcn_layer_forward.1} parent=76 // pred_fallthru
          _
        %s984 = sand.u32 %s161, 1
        %s985 = scalar_lea.sflag [#allocation5], %s984
        %s986 = sand.u32 %s161, 1
        %s987 = smul.addr %s986, 128
        %s988 = scalar_lea.vmem [#allocation4], %s987
        // Predicated region
        $region90: #{gcn_layer_forward.1} parent=76 // pred_check
          %p989 = pneg %p171
        $region91: #{gcn_layer_forward.1} parent=76 // pred_check_branch
          %991 = sbr.rel (%p989) target = $region93
        $region92: #{gcn_layer_forward.1} parent=76 // pred_region
          %s992 = smul.u32 16, %s23
          %s994 = ssub.s32 2048, 2048
          %995 = vsyncadd %s985, %s994
          %s996 = smul.addr %s992, 128
          %s997 = scalar_lea.hbm %s5, %s996
          %s998 = sshll.u32 %s988, 4
          %s999 = int_to_ptr.vmem [resolvable:$true] %s998
          %1004 = dma.vmem_to_hbm [thread:$0]  %s999, 2048, %s997, %s985, 128, 128, 8
        $region93: #{gcn_layer_forward.1} parent=76 // pred_fallthru
          _
      $region77: #{gcn_layer_forward.1} parent=5 // pred_fallthru
        _
      %p1005 = scmp.le.s32.totalorder 2, %s14
      // Predicated region
      $region94: #{gcn_layer_forward.1} parent=5 // pred_check
        %p1006 = pneg %p1005
      $region95: #{gcn_layer_forward.1} parent=5 // pred_check_branch
        %1008 = sbr.rel (%p1006) target = $region97
      $region96: #{gcn_layer_forward.1} parent=5 // pred_region
        %s1009 = ssub.s32 %s14, 2
        // Predicated region
        $region98: #{gcn_layer_forward.1} parent=96 // pred_check
          %p1010 = pneg %p177
        $region99: #{gcn_layer_forward.1} parent=96 // pred_check_branch
          %1012 = sbr.rel (%p1010) target = $region101
        $region100: #{gcn_layer_forward.1} parent=96 // pred_region
          %s1013 = sand.u32 %s162, 1
          %s1014 = scalar_lea.sflag [#allocation5], %s1013
          %s1015 = sand.u32 %s162, 1
          %s1016 = smul.addr %s1015, 128
          %s1017 = scalar_lea.vmem [#allocation4], %s1016
          %1018 = dma.done %s1014, 2048
        $region101: #{gcn_layer_forward.1} parent=96 // pred_fallthru
          _
      $region97: #{gcn_layer_forward.1} parent=5 // pred_fallthru
        _
    $region6: #{gcn_layer_forward.1} parent=1 // loop_footer
      %s18 = sadd.s32 1, %s14
    $region7: #{gcn_layer_forward.1} parent=1 // loop_footer_branch
      %13 = sbr.rel target = $region3
    $region8: #{gcn_layer_forward.1} parent=1 // loop_exit
      _
    %1019 = vsyncpa [#allocation5], 1
    %s1020 = scalar_lea.sflag [#allocation5], 1
    %1021 = vsyncpa %s1020, 1

</llo_original>
